<compile_context>
chip_gen: v7x
topology: tpu7x:2x2x1
jax: 0.10.0
libtpu: 0.0.40
codegen_flags: <defaults>
</compile_context>

<pallas_src>
import functools

import jax
import jax.numpy as jnp
from jax.experimental import pallas as pl
from jax.experimental.pallas import tpu as pltpu

_LANE = 128
_MAX_LANE_MULT = 32                       # block lane width capped at 32 * 128 = 4096
_TARGET_BLOCK_BYTES = 2 * 1024 * 1024     # ~2 MiB / block; 4 live buffers ≈ 8 MiB VMEM


def _zero_kernel(x_ref, o_ref):
    # Faithful x.mul(0.0): read the tile and multiply by zero so non-finite inputs
    # propagate exactly like torch (NaN*0 = NaN, inf*0 = NaN). One VPU mul per vreg;
    # the kernel is purely HBM-bandwidth bound.
    o_ref[...] = x_ref[...] * 0.0


def _sublane_pack(dtype) -> int:
    # Sub-32-bit dtypes pack along sublanes: row tiles should be multiples of
    # 8 (f32), 16 (bf16/f16), 32 (int8/fp8).
    return 8 * max(1, 4 // jnp.dtype(dtype).itemsize)


def _pick_lane_width(total: int) -> int:
    # Largest multiple of 128 that divides `total`, capped at 4096 lanes.
    m = total // _LANE
    for f in range(min(_MAX_LANE_MULT, m), 0, -1):
        if m % f == 0:
            return _LANE * f
    return _LANE


@functools.partial(jax.jit, static_argnames=("stride",))
def zero_forward(x, stride: int = 1):
    # Spatial sub-sampling (matches x[:, :, ::stride, ::stride]).
    xs = x if stride == 1 else x[:, :, ::stride, ::stride]
    out_shape = xs.shape

    if not jnp.issubdtype(x.dtype, jnp.floating):
        # torch promotes int/bool tensors through .mul(0.0) to the default float dtype;
        # no NaN/Inf to propagate, so skip the read entirely (write-only, ~2x cheaper).
        return jnp.zeros(out_shape, jnp.float32)

    total = xs.size
    itemsize = jnp.dtype(x.dtype).itemsize

    if total % _LANE != 0:
        # TODO(synk): totals not divisible by 128 (rare for NCHW nets) would need a
        # padded lane tail; fall back to one fused XLA multiply instead.
        return xs * 0.0

    # Lane-dense slab: (rows, lane) with lane a big multiple of 128 -> unmasked stores,
    # independent of whatever Ho*Wo happens to be. Contiguous reshape, no transpose.
    lane = _pick_lane_width(total)
    rows = total // lane
    slab = xs.reshape(rows, lane)

    pack = _sublane_pack(x.dtype)
    # ~2 MiB blocks, rounded to the sublane pack.
    tr = max(pack, (_TARGET_BLOCK_BYTES // (lane * itemsize)) // pack * pack)
    # Keep the "parallel" grid axis at >= 2 (ideally >= 4) steps so the v7x megacore
    # can shard it; degrade gracefully for tiny inputs (full-extent block is legal).
    if rows >= 4 * pack:
        tr = min(tr, max(pack, (rows // 4) // pack * pack))
    elif rows >= 2 * pack:
        tr = min(tr, max(pack, (rows // 2) // pack * pack))
    else:
        tr = rows

    grid_r = pl.cdiv(rows, tr)  # non-dividing tail block is padded/masked by Pallas

    out = pl.pallas_call(
        _zero_kernel,
        out_shape=jax.ShapeDtypeStruct((rows, lane), x.dtype),
        grid=(grid_r,),
        in_specs=[pl.BlockSpec((tr, lane), lambda i: (i, 0))],
        out_specs=pl.BlockSpec((tr, lane), lambda i: (i, 0)),
        compiler_params=pltpu.CompilerParams(
            dimension_semantics=("parallel",)),
        cost_estimate=pl.CostEstimate(
            flops=total,
            transcendentals=0,
            bytes_accessed=2 * total * itemsize),
    )(slab)

    return out.reshape(out_shape)


if __name__ == "__main__":
    key = jax.random.PRNGKey(0)
    x = jax.random.normal(key, (2, 4, 16, 16), jnp.float32)

    for stride in (1, 2):
        out = zero_forward(x, stride=stride)
        jax.block_until_ready(out)

        # pure-JAX reference of the torch forward
        ref = (x if stride == 1 else x[:, :, ::stride, ::stride]) * 0.0

        assert out.shape == ref.shape, (out.shape, ref.shape)
        assert out.dtype == ref.dtype, (out.dtype, ref.dtype)
        assert jnp.array_equal(out, ref), float(jnp.max(jnp.abs(out - ref)))

    # bf16 path (dtype-aware sublane pack) — still compares exactly against x*0.
    xb = x.astype(jnp.bfloat16)
    outb = zero_forward(xb, stride=1)
    jax.block_until_ready(outb)
    assert outb.dtype == jnp.bfloat16 and jnp.array_equal(outb, xb * 0.0)

    print("KERNEL_OK")
</pallas_src>

<mosaic_0001>
module attributes {stable_mosaic.version = 11 : i64} {
  func.func @_zero_kernel(%arg0: i32, %arg1: memref<1x2048xf32, #tpu.memory_space<vmem>>, %arg2: memref<1x2048xf32, #tpu.memory_space<vmem>>) attributes {dimension_semantics = [#tpu.dimension_semantics<parallel>], iteration_bounds = array<i64: 1>, scalar_prefetch = 0 : i64, scratch_operands = 0 : i64, tpu.core_type = #tpu.core_type<tc>, window_params = [{transform_indices = @transform_0, window_bounds = array<i64: 1, 2048>}, {transform_indices = @transform_1, window_bounds = array<i64: 1, 2048>}]} {
    %c0 = arith.constant 0 : index
    %c0_0 = arith.constant 0 : index
    %0 = vector.load %arg1[%c0, %c0_0] : memref<1x2048xf32, #tpu.memory_space<vmem>>, vector<1x2048xf32>
    %cst = arith.constant 0.000000e+00 : f32
    %1 = vector.broadcast %cst : f32 to vector<1x2048xf32>
    %2 = arith.mulf %0, %1 : vector<1x2048xf32>
    %c0_1 = arith.constant 0 : index
    %c0_2 = arith.constant 0 : index
    %3 = vector.load %arg2[%c0_1, %c0_2] : memref<1x2048xf32, #tpu.memory_space<vmem>>, vector<1x2048xf32>
    tpu.vector_store %arg2[%c0_1, %c0_2], %2 {strides = array<i32>} : memref<1x2048xf32, #tpu.memory_space<vmem>>, vector<1x2048xf32>,
    return
  }
  func.func @transform_0(%arg0: i32) -> (i32, i32) {
    %c0_i32 = arith.constant 0 : i32
    %c0_i32_0 = arith.constant 0 : i32
    return %arg0, %c0_i32 : i32, i32
  }
  func.func @transform_1(%arg0: i32) -> (i32, i32) {
    %c0_i32 = arith.constant 0 : i32
    %c0_i32_0 = arith.constant 0 : i32
    return %arg0, %c0_i32 : i32, i32
  }
}

</mosaic_0001>

<llo_original>
// kernel: zero_forward.1
$region0: #{zero_forward.1}
  #allocation0 [shape = 'u32[]', space=smem, size = 0x4, offset = 0x4, fixed_abs, tag = 'smem constant byte address 0x4 - core index']
  #allocation1 [shape = 'u32[144,128]{1,0:T(1,128)}', space=vmem, size = 0x12000, scoped, tag = 'internal scratch']
  %s0 = inlined_call_operand.vmem [shape: f32[1,2048], index: 0, kind: input, shape index: {}]
  %s1 = inlined_call_operand.vmem [shape: f32[1,2048], index: 1, kind: output, shape index: {}]
  %s2 = sld [smem:[#allocation0]]
  $region14: #{zero_forward.1} parent=0
    _
  %s4 = ssub.s32 1, %s2
  %s5 = scalar_select 0, %s4, %s2
  // Predicated region
  $region2: #{zero_forward.1} parent=0 // pred_check
    _
  $region3: #{zero_forward.1} parent=0 // pred_check_branch
    %7 = sbr.rel (0) target = $region5
  $region4: #{zero_forward.1} parent=0 // pred_region
    _
  $region5: #{zero_forward.1} parent=0 // pred_fallthru
    _
  %v8 = vld [vmem:[%s0] sm:$0xff]
  %v9 = vld [vmem:[%s0 + $0x8] sm:$0xff]
  %v10 = vmul.f32 %v8, 0.0
  %v11 = vmul.f32 %v9, 0.0
  %12 = vst [vmem:[%s1] sm:$0xff] %v10
  %13 = vst [vmem:[%s1 + $0x8] sm:$0xff] %v11
  // Predicated region
  $region6: #{zero_forward.1} parent=0 // pred_check
    _
  $region7: #{zero_forward.1} parent=0 // pred_check_branch
    %15 = sbr.rel (0) target = $region9
  $region8: #{zero_forward.1} parent=0 // pred_region
    _
  $region9: #{zero_forward.1} parent=0 // pred_fallthru
    _
  // Predicated region
  $region10: #{zero_forward.1} parent=0 // pred_check
    _
  $region11: #{zero_forward.1} parent=0 // pred_check_branch
    %17 = sbr.rel (0) target = $region13
  $region12: #{zero_forward.1} parent=0 // pred_region
    _
  $region13: #{zero_forward.1} parent=0 // pred_fallthru
    _

</llo_original>
